<compile_context>
chip_gen: v7x
topology: tpu7x:2x2x1
jax: 0.10.0
libtpu: 0.0.40
codegen_flags: <defaults>
</compile_context>

<pallas_src>
import functools

import jax
import jax.numpy as jnp
import numpy as np
from jax.experimental import pallas as pl
from jax.experimental.pallas import tpu as pltpu

K = 11          # conv kernel size
PAD = 5         # padding (same-length conv)
BN_EPS = 1e-5   # PyTorch BatchNorm1d default


def eeg_decoder_kernel(x_ref, w1_ref, w2_ref, out_ref, *, seg_len):
    """Whole (batch-tile) forward pass in one step.

    x_ref  : (Cin, N)          input, channels on sublanes, batch*time on lanes (N = TB*L)
    w1_ref : (C1, K*Cin + 1)   conv1 weight slab with BN1 scale folded in and BN1 shift
                               appended as the last column (bias rides the ones-row)
    w2_ref : (C2, K*C1 + 1)    conv2 weight slab, BN2 folded likewise
    out_ref: (C2, N)           output, same layout as the input
    """
    n_lanes = x_ref.shape[1]

    # ---- boundary masks, built once and shared by both convs -----------------------------
    # t-within-segment so a lane roll never mixes adjacent batch segments.
    tmod = jax.lax.broadcasted_iota(jnp.int32, (1, n_lanes), 1) % seg_len
    masks = []
    for k in range(K):
        sh = k - PAD
        if sh == 0:
            masks.append(None)
        else:
            valid = jnp.logical_and(tmod + sh >= 0, tmod + sh < seg_len)
            masks.append(valid.astype(jnp.float32))
    ones_row = jnp.ones((1, n_lanes), jnp.float32)   # bias row of the patch matrix

    def im2col(v):
        # v: (C, N) -> (K*C + 1, N); row k*C + c holds v[c, t + (k-PAD)] (zero outside the
        # segment), last row is all-ones so the appended weight column adds the BN shift.
        parts = []
        for k in range(K):
            sh = k - PAD
            if sh == 0:
                parts.append(v)
            else:
                rolled = pltpu.roll(v, shift=(-sh) % n_lanes, axis=1)
                parts.append(rolled * masks[k])
        parts.append(ones_row)
        return jnp.concatenate(parts, axis=0)

    x = x_ref[...].astype(jnp.float32)

    # ---- Conv1d #1 + BatchNorm1d #1 (folded), single 89-deep MXU matmul -------------------
    a1 = jnp.dot(w1_ref[...], im2col(x), preferred_element_type=jnp.float32)   # (C1, N)

    # ---- ReLU (Dropout1d == identity in eval) ---------------------------------------------
    h = jnp.maximum(a1, 0.0)

    # ---- Conv1d #2 + BatchNorm1d #2 (folded); h never leaves vregs ------------------------
    a2 = jnp.dot(w2_ref[...], im2col(h), preferred_element_type=jnp.float32)   # (C2, N)

    out_ref[...] = a2.astype(out_ref.dtype)


@functools.partial(jax.jit, static_argnames=("batch_tiles",))
def eeg_decoder_forward(x_ncl, w1, w2, s1, b1, s2, b2, *, batch_tiles=1):
    """x_ncl: (B, Cin, L) like PyTorch.  Returns (B, 2*Cin, L).

    batch_tiles: number of grid steps the batch is split into (1 for v5e/v6e; 2 on v7x
    to occupy both TensorCores). Must divide B.
    """
    B, Cin, L = x_ncl.shape
    C1 = w1.shape[0]
    C2 = w2.shape[0]
    assert B % batch_tiles == 0
    tb = B // batch_tiles
    n_total = B * L
    n_tile = tb * L

    # Input: (B, Cin, L) -> (Cin, B*L). Tiny (~KiB) XLA transpose; keeps the kernel's lane
    # axis fully dense (multiple of 128) and channels on sublanes.
    x2d = jnp.transpose(x_ncl, (1, 0, 2)).reshape(Cin, n_total).astype(jnp.float32)

    # Conv weights (Cout, Cin, K) -> 2D slab (Cout, K*Cin) with column order (k*Cin + c),
    # BN scale folded into the rows, BN shift appended as the trailing "bias" column.
    w1_2d = jnp.transpose(w1, (0, 2, 1)).reshape(C1, K * Cin) * s1[:, None]
    w1_slab = jnp.concatenate([w1_2d, b1[:, None]], axis=1).astype(jnp.float32)
    w2_2d = jnp.transpose(w2, (0, 2, 1)).reshape(C2, K * C1) * s2[:, None]
    w2_slab = jnp.concatenate([w2_2d, b2[:, None]], axis=1).astype(jnp.float32)

    y2d = pl.pallas_call(
        functools.partial(eeg_decoder_kernel, seg_len=L),
        out_shape=jax.ShapeDtypeStruct((C2, n_total), jnp.float32),
        grid=(batch_tiles,),
        in_specs=[
            pl.BlockSpec((Cin, n_tile), lambda i: (0, i)),        # batch-tile of the input
            pl.BlockSpec((C1, K * Cin + 1), lambda i: (0, 0)),    # weights: constant -> resident
            pl.BlockSpec((C2, K * C1 + 1), lambda i: (0, 0)),
        ],
        out_specs=pl.BlockSpec((C2, n_tile), lambda i: (0, i)),
        compiler_params=pltpu.CompilerParams(dimension_semantics=("parallel",)),
    )(x2d, w1_slab, w2_slab)

    # (C2, B*L) -> (B, C2, L)
    return y2d.reshape(C2, B, L).transpose(1, 0, 2)


def reference_forward(x_ncl, w1, w2, g1, be1, m1, v1, g2, be2, m2, v2):
    """Pure-JAX reference matching the PyTorch module in eval mode."""
    dn = ("NCH", "OIH", "NCH")
    hp = jax.lax.Precision.HIGHEST
    h = jax.lax.conv_general_dilated(x_ncl, w1, (1,), [(PAD, PAD)],
                                     dimension_numbers=dn, precision=hp)
    h = (h - m1[None, :, None]) * (g1 / jnp.sqrt(v1 + BN_EPS))[None, :, None] + be1[None, :, None]
    h = jnp.maximum(h, 0.0)
    y = jax.lax.conv_general_dilated(h, w2, (1,), [(PAD, PAD)],
                                     dimension_numbers=dn, precision=hp)
    y = (y - m2[None, :, None]) * (g2 / jnp.sqrt(v2 + BN_EPS))[None, :, None] + be2[None, :, None]
    return y


if __name__ == "__main__":
    # Small shapes consistent with the module: eeg_channel -> 8, seq length -> 128, batch -> 2.
    B, Cin, L = 2, 8, 128
    C1, C2 = Cin, 2 * Cin

    key = jax.random.PRNGKey(0)
    ks = jax.random.split(key, 9)

    x = jax.random.normal(ks[0], (B, Cin, L), jnp.float32)

    # Deterministic synthetic parameters (module __init__ shapes).
    w1 = 0.1 * jax.random.normal(ks[1], (C1, Cin, K), jnp.float32)   # Conv1d(Cin, Cin, 11)
    w2 = 0.1 * jax.random.normal(ks[2], (C2, C1, K), jnp.float32)    # Conv1d(Cin, 2*Cin, 11)

    gamma1 = 1.0 + 0.1 * jax.random.normal(ks[3], (C1,), jnp.float32)
    beta1 = 0.1 * jax.random.normal(ks[4], (C1,), jnp.float32)
    mean1 = 0.05 * jax.random.normal(ks[5], (C1,), jnp.float32)
    var1 = 1.0 + 0.1 * jnp.abs(jax.random.normal(ks[6], (C1,), jnp.float32))

    gamma2 = 1.0 + 0.1 * jax.random.normal(ks[7], (C2,), jnp.float32)
    beta2 = 0.1 * jax.random.normal(ks[8], (C2,), jnp.float32)
    mean2 = jnp.zeros((C2,), jnp.float32)
    var2 = jnp.ones((C2,), jnp.float32)

    # Fold BatchNorm (inference) into per-channel scale / shift.
    s1 = gamma1 / jnp.sqrt(var1 + BN_EPS)
    b1 = beta1 - mean1 * s1
    s2 = gamma2 / jnp.sqrt(var2 + BN_EPS)
    b2 = beta2 - mean2 * s2

    out = eeg_decoder_forward(x, w1, w2, s1, b1, s2, b2, batch_tiles=1)
    out = jax.block_until_ready(out)

    ref = reference_forward(x, w1, w2, gamma1, beta1, mean1, var1,
                            gamma2, beta2, mean2, var2)
    np.testing.assert_allclose(np.asarray(out), np.asarray(ref), rtol=2e-4, atol=2e-4)

    assert out.shape == (B, C2, L)
    print("KERNEL_OK")
</pallas_src>

<mosaic_0001>
module attributes {stable_mosaic.version = 11 : i64} {
  func.func @eeg_decoder_kernel(%arg0: i32, %arg1: memref<8x256xf32, #tpu.memory_space<vmem>>, %arg2: memref<8x89xf32, #tpu.memory_space<vmem>>, %arg3: memref<16x89xf32, #tpu.memory_space<vmem>>, %arg4: memref<16x256xf32, #tpu.memory_space<vmem>>) attributes {dimension_semantics = [#tpu.dimension_semantics<parallel>], iteration_bounds = array<i64: 1>, scalar_prefetch = 0 : i64, scratch_operands = 0 : i64, tpu.core_type = #tpu.core_type<tc>, window_params = [{transform_indices = @transform_0, window_bounds = array<i64: 8, 256>}, {pipeline_mode = #tpu.pipeline_mode<synchronous>, transform_indices = @transform_1, window_bounds = array<i64: 8, 89>}, {pipeline_mode = #tpu.pipeline_mode<synchronous>, transform_indices = @transform_2, window_bounds = array<i64: 16, 89>}, {transform_indices = @transform_3, window_bounds = array<i64: 16, 256>}]} {
    %0 = tpu.iota {dimensions = array<i32: 1>} : vector<1x256xi32>
    %c128_i32 = arith.constant 128 : i32
    %c0_i32 = arith.constant 0 : i32
    %1 = arith.cmpi eq, %c128_i32, %c0_i32 : i32
    %c1_i32 = arith.constant 1 : i32
    %2 = arith.select %1, %c1_i32, %c128_i32 : i32
    %3 = vector.broadcast %2 : i32 to vector<1x256xi32>
    %4 = arith.remsi %0, %3 : vector<1x256xi32>
    %c0_i32_0 = arith.constant 0 : i32
    %5 = vector.broadcast %c0_i32_0 : i32 to vector<1x256xi32>
    %6 = arith.cmpi ne, %4, %5 : vector<1x256xi32>
    %c0_i32_1 = arith.constant 0 : i32
    %7 = vector.broadcast %c0_i32_1 : i32 to vector<1x256xi32>
    %8 = arith.cmpi slt, %4, %7 : vector<1x256xi32>
    %c0_i32_2 = arith.constant 0 : i32
    %9 = arith.cmpi slt, %2, %c0_i32_2 : i32
    %10 = vector.broadcast %9 : i1 to vector<1x256xi1>
    %11 = vector.broadcast %10 : vector<1x256xi1> to vector<1x256xi1>
    %12 = arith.xori %8, %11 : vector<1x256xi1>
    %13 = arith.andi %12, %6 : vector<1x256xi1>
    %14 = vector.broadcast %2 : i32 to vector<1x256xi32>
    %15 = arith.addi %4, %14 : vector<1x256xi32>
    %16 = arith.select %13, %15, %4 : vector<1x256xi1>, vector<1x256xi32>
    %c-5_i32 = arith.constant -5 : i32
    %17 = vector.broadcast %c-5_i32 : i32 to vector<1x256xi32>
    %18 = arith.addi %16, %17 : vector<1x256xi32>
    %c0_i32_3 = arith.constant 0 : i32
    %19 = vector.broadcast %c0_i32_3 : i32 to vector<1x256xi32>
    %20 = arith.cmpi sge, %18, %19 : vector<1x256xi32>
    %c-5_i32_4 = arith.constant -5 : i32
    %21 = vector.broadcast %c-5_i32_4 : i32 to vector<1x256xi32>
    %22 = arith.addi %16, %21 : vector<1x256xi32>
    %c128_i32_5 = arith.constant 128 : i32
    %23 = vector.broadcast %c128_i32_5 : i32 to vector<1x256xi32>
    %24 = arith.cmpi slt, %22, %23 : vector<1x256xi32>
    %25 = arith.andi %20, %24 : vector<1x256xi1>
    %26 = arith.extui %25 : vector<1x256xi1> to vector<1x256xi32>
    %27 = arith.sitofp %26 : vector<1x256xi32> to vector<1x256xf32>
    %c-4_i32 = arith.constant -4 : i32
    %28 = vector.broadcast %c-4_i32 : i32 to vector<1x256xi32>
    %29 = arith.addi %16, %28 : vector<1x256xi32>
    %c0_i32_6 = arith.constant 0 : i32
    %30 = vector.broadcast %c0_i32_6 : i32 to vector<1x256xi32>
    %31 = arith.cmpi sge, %29, %30 : vector<1x256xi32>
    %c-4_i32_7 = arith.constant -4 : i32
    %32 = vector.broadcast %c-4_i32_7 : i32 to vector<1x256xi32>
    %33 = arith.addi %16, %32 : vector<1x256xi32>
    %c128_i32_8 = arith.constant 128 : i32
    %34 = vector.broadcast %c128_i32_8 : i32 to vector<1x256xi32>
    %35 = arith.cmpi slt, %33, %34 : vector<1x256xi32>
    %36 = arith.andi %31, %35 : vector<1x256xi1>
    %37 = arith.extui %36 : vector<1x256xi1> to vector<1x256xi32>
    %38 = arith.sitofp %37 : vector<1x256xi32> to vector<1x256xf32>
    %c-3_i32 = arith.constant -3 : i32
    %39 = vector.broadcast %c-3_i32 : i32 to vector<1x256xi32>
    %40 = arith.addi %16, %39 : vector<1x256xi32>
    %c0_i32_9 = arith.constant 0 : i32
    %41 = vector.broadcast %c0_i32_9 : i32 to vector<1x256xi32>
    %42 = arith.cmpi sge, %40, %41 : vector<1x256xi32>
    %c-3_i32_10 = arith.constant -3 : i32
    %43 = vector.broadcast %c-3_i32_10 : i32 to vector<1x256xi32>
    %44 = arith.addi %16, %43 : vector<1x256xi32>
    %c128_i32_11 = arith.constant 128 : i32
    %45 = vector.broadcast %c128_i32_11 : i32 to vector<1x256xi32>
    %46 = arith.cmpi slt, %44, %45 : vector<1x256xi32>
    %47 = arith.andi %42, %46 : vector<1x256xi1>
    %48 = arith.extui %47 : vector<1x256xi1> to vector<1x256xi32>
    %49 = arith.sitofp %48 : vector<1x256xi32> to vector<1x256xf32>
    %c-2_i32 = arith.constant -2 : i32
    %50 = vector.broadcast %c-2_i32 : i32 to vector<1x256xi32>
    %51 = arith.addi %16, %50 : vector<1x256xi32>
    %c0_i32_12 = arith.constant 0 : i32
    %52 = vector.broadcast %c0_i32_12 : i32 to vector<1x256xi32>
    %53 = arith.cmpi sge, %51, %52 : vector<1x256xi32>
    %c-2_i32_13 = arith.constant -2 : i32
    %54 = vector.broadcast %c-2_i32_13 : i32 to vector<1x256xi32>
    %55 = arith.addi %16, %54 : vector<1x256xi32>
    %c128_i32_14 = arith.constant 128 : i32
    %56 = vector.broadcast %c128_i32_14 : i32 to vector<1x256xi32>
    %57 = arith.cmpi slt, %55, %56 : vector<1x256xi32>
    %58 = arith.andi %53, %57 : vector<1x256xi1>
    %59 = arith.extui %58 : vector<1x256xi1> to vector<1x256xi32>
    %60 = arith.sitofp %59 : vector<1x256xi32> to vector<1x256xf32>
    %c-1_i32 = arith.constant -1 : i32
    %61 = vector.broadcast %c-1_i32 : i32 to vector<1x256xi32>
    %62 = arith.addi %16, %61 : vector<1x256xi32>
    %c0_i32_15 = arith.constant 0 : i32
    %63 = vector.broadcast %c0_i32_15 : i32 to vector<1x256xi32>
    %64 = arith.cmpi sge, %62, %63 : vector<1x256xi32>
    %c-1_i32_16 = arith.constant -1 : i32
    %65 = vector.broadcast %c-1_i32_16 : i32 to vector<1x256xi32>
    %66 = arith.addi %16, %65 : vector<1x256xi32>
    %c128_i32_17 = arith.constant 128 : i32
    %67 = vector.broadcast %c128_i32_17 : i32 to vector<1x256xi32>
    %68 = arith.cmpi slt, %66, %67 : vector<1x256xi32>
    %69 = arith.andi %64, %68 : vector<1x256xi1>
    %70 = arith.extui %69 : vector<1x256xi1> to vector<1x256xi32>
    %71 = arith.sitofp %70 : vector<1x256xi32> to vector<1x256xf32>
    %c1_i32_18 = arith.constant 1 : i32
    %72 = vector.broadcast %c1_i32_18 : i32 to vector<1x256xi32>
    %73 = arith.addi %16, %72 : vector<1x256xi32>
    %c0_i32_19 = arith.constant 0 : i32
    %74 = vector.broadcast %c0_i32_19 : i32 to vector<1x256xi32>
    %75 = arith.cmpi sge, %73, %74 : vector<1x256xi32>
    %c1_i32_20 = arith.constant 1 : i32
    %76 = vector.broadcast %c1_i32_20 : i32 to vector<1x256xi32>
    %77 = arith.addi %16, %76 : vector<1x256xi32>
    %c128_i32_21 = arith.constant 128 : i32
    %78 = vector.broadcast %c128_i32_21 : i32 to vector<1x256xi32>
    %79 = arith.cmpi slt, %77, %78 : vector<1x256xi32>
    %80 = arith.andi %75, %79 : vector<1x256xi1>
    %81 = arith.extui %80 : vector<1x256xi1> to vector<1x256xi32>
    %82 = arith.sitofp %81 : vector<1x256xi32> to vector<1x256xf32>
    %c2_i32 = arith.constant 2 : i32
    %83 = vector.broadcast %c2_i32 : i32 to vector<1x256xi32>
    %84 = arith.addi %16, %83 : vector<1x256xi32>
    %c0_i32_22 = arith.constant 0 : i32
    %85 = vector.broadcast %c0_i32_22 : i32 to vector<1x256xi32>
    %86 = arith.cmpi sge, %84, %85 : vector<1x256xi32>
    %c2_i32_23 = arith.constant 2 : i32
    %87 = vector.broadcast %c2_i32_23 : i32 to vector<1x256xi32>
    %88 = arith.addi %16, %87 : vector<1x256xi32>
    %c128_i32_24 = arith.constant 128 : i32
    %89 = vector.broadcast %c128_i32_24 : i32 to vector<1x256xi32>
    %90 = arith.cmpi slt, %88, %89 : vector<1x256xi32>
    %91 = arith.andi %86, %90 : vector<1x256xi1>
    %92 = arith.extui %91 : vector<1x256xi1> to vector<1x256xi32>
    %93 = arith.sitofp %92 : vector<1x256xi32> to vector<1x256xf32>
    %c3_i32 = arith.constant 3 : i32
    %94 = vector.broadcast %c3_i32 : i32 to vector<1x256xi32>
    %95 = arith.addi %16, %94 : vector<1x256xi32>
    %c0_i32_25 = arith.constant 0 : i32
    %96 = vector.broadcast %c0_i32_25 : i32 to vector<1x256xi32>
    %97 = arith.cmpi sge, %95, %96 : vector<1x256xi32>
    %c3_i32_26 = arith.constant 3 : i32
    %98 = vector.broadcast %c3_i32_26 : i32 to vector<1x256xi32>
    %99 = arith.addi %16, %98 : vector<1x256xi32>
    %c128_i32_27 = arith.constant 128 : i32
    %100 = vector.broadcast %c128_i32_27 : i32 to vector<1x256xi32>
    %101 = arith.cmpi slt, %99, %100 : vector<1x256xi32>
    %102 = arith.andi %97, %101 : vector<1x256xi1>
    %103 = arith.extui %102 : vector<1x256xi1> to vector<1x256xi32>
    %104 = arith.sitofp %103 : vector<1x256xi32> to vector<1x256xf32>
    %c4_i32 = arith.constant 4 : i32
    %105 = vector.broadcast %c4_i32 : i32 to vector<1x256xi32>
    %106 = arith.addi %16, %105 : vector<1x256xi32>
    %c0_i32_28 = arith.constant 0 : i32
    %107 = vector.broadcast %c0_i32_28 : i32 to vector<1x256xi32>
    %108 = arith.cmpi sge, %106, %107 : vector<1x256xi32>
    %c4_i32_29 = arith.constant 4 : i32
    %109 = vector.broadcast %c4_i32_29 : i32 to vector<1x256xi32>
    %110 = arith.addi %16, %109 : vector<1x256xi32>
    %c128_i32_30 = arith.constant 128 : i32
    %111 = vector.broadcast %c128_i32_30 : i32 to vector<1x256xi32>
    %112 = arith.cmpi slt, %110, %111 : vector<1x256xi32>
    %113 = arith.andi %108, %112 : vector<1x256xi1>
    %114 = arith.extui %113 : vector<1x256xi1> to vector<1x256xi32>
    %115 = arith.sitofp %114 : vector<1x256xi32> to vector<1x256xf32>
    %c5_i32 = arith.constant 5 : i32
    %116 = vector.broadcast %c5_i32 : i32 to vector<1x256xi32>
    %117 = arith.addi %16, %116 : vector<1x256xi32>
    %c0_i32_31 = arith.constant 0 : i32
    %118 = vector.broadcast %c0_i32_31 : i32 to vector<1x256xi32>
    %119 = arith.cmpi sge, %117, %118 : vector<1x256xi32>
    %c5_i32_32 = arith.constant 5 : i32
    %120 = vector.broadcast %c5_i32_32 : i32 to vector<1x256xi32>
    %121 = arith.addi %16, %120 : vector<1x256xi32>
    %c128_i32_33 = arith.constant 128 : i32
    %122 = vector.broadcast %c128_i32_33 : i32 to vector<1x256xi32>
    %123 = arith.cmpi slt, %121, %122 : vector<1x256xi32>
    %124 = arith.andi %119, %123 : vector<1x256xi1>
    %125 = arith.extui %124 : vector<1x256xi1> to vector<1x256xi32>
    %126 = arith.sitofp %125 : vector<1x256xi32> to vector<1x256xf32>
    %cst = arith.constant 1.000000e+00 : f32
    %127 = vector.broadcast %cst : f32 to vector<1x256xf32>
    %c0 = arith.constant 0 : index
    %c0_34 = arith.constant 0 : index
    %128 = vector.load %arg1[%c0, %c0_34] : memref<8x256xf32, #tpu.memory_space<vmem>>, vector<8x256xf32>
    %c0_35 = arith.constant 0 : index
    %c0_36 = arith.constant 0 : index
    %129 = vector.load %arg2[%c0_35, %c0_36] : memref<8x89xf32, #tpu.memory_space<vmem>>, vector<8x89xf32>
    %c5_i32_37 = arith.constant 5 : i32
    %130 = tpu.dynamic_rotate %128 by %c5_i32_37 dim 1 : vector<8x256xf32>, i32 -> vector<8x256xf32>
    %131 = vector.broadcast %27 : vector<1x256xf32> to vector<8x256xf32>
    %132 = arith.mulf %130, %131 : vector<8x256xf32>
    %c4_i32_38 = arith.constant 4 : i32
    %133 = tpu.dynamic_rotate %128 by %c4_i32_38 dim 1 : vector<8x256xf32>, i32 -> vector<8x256xf32>
    %134 = vector.broadcast %38 : vector<1x256xf32> to vector<8x256xf32>
    %135 = arith.mulf %133, %134 : vector<8x256xf32>
    %c3_i32_39 = arith.constant 3 : i32
    %136 = tpu.dynamic_rotate %128 by %c3_i32_39 dim 1 : vector<8x256xf32>, i32 -> vector<8x256xf32>
    %137 = vector.broadcast %49 : vector<1x256xf32> to vector<8x256xf32>
    %138 = arith.mulf %136, %137 : vector<8x256xf32>
    %c2_i32_40 = arith.constant 2 : i32
    %139 = tpu.dynamic_rotate %128 by %c2_i32_40 dim 1 : vector<8x256xf32>, i32 -> vector<8x256xf32>
    %140 = vector.broadcast %60 : vector<1x256xf32> to vector<8x256xf32>
    %141 = arith.mulf %139, %140 : vector<8x256xf32>
    %c1_i32_41 = arith.constant 1 : i32
    %142 = tpu.dynamic_rotate %128 by %c1_i32_41 dim 1 : vector<8x256xf32>, i32 -> vector<8x256xf32>
    %143 = vector.broadcast %71 : vector<1x256xf32> to vector<8x256xf32>
    %144 = arith.mulf %142, %143 : vector<8x256xf32>
    %c255_i32 = arith.constant 255 : i32
    %145 = tpu.dynamic_rotate %128 by %c255_i32 dim 1 : vector<8x256xf32>, i32 -> vector<8x256xf32>
    %146 = vector.broadcast %82 : vector<1x256xf32> to vector<8x256xf32>
    %147 = arith.mulf %145, %146 : vector<8x256xf32>
    %c254_i32 = arith.constant 254 : i32
    %148 = tpu.dynamic_rotate %128 by %c254_i32 dim 1 : vector<8x256xf32>, i32 -> vector<8x256xf32>
    %149 = vector.broadcast %93 : vector<1x256xf32> to vector<8x256xf32>
    %150 = arith.mulf %148, %149 : vector<8x256xf32>
    %c253_i32 = arith.constant 253 : i32
    %151 = tpu.dynamic_rotate %128 by %c253_i32 dim 1 : vector<8x256xf32>, i32 -> vector<8x256xf32>
    %152 = vector.broadcast %104 : vector<1x256xf32> to vector<8x256xf32>
    %153 = arith.mulf %151, %152 : vector<8x256xf32>
    %c252_i32 = arith.constant 252 : i32
    %154 = tpu.dynamic_rotate %128 by %c252_i32 dim 1 : vector<8x256xf32>, i32 -> vector<8x256xf32>
    %155 = vector.broadcast %115 : vector<1x256xf32> to vector<8x256xf32>
    %156 = arith.mulf %154, %155 : vector<8x256xf32>
    %c251_i32 = arith.constant 251 : i32
    %157 = tpu.dynamic_rotate %128 by %c251_i32 dim 1 : vector<8x256xf32>, i32 -> vector<8x256xf32>
    %158 = vector.broadcast %126 : vector<1x256xf32> to vector<8x256xf32>
    %159 = arith.mulf %157, %158 : vector<8x256xf32>
    %160 = tpu.concatenate %132, %135, %138, %141, %144, %128, %147, %150, %153, %156, %159, %127 in 0 : vector<8x256xf32>, vector<8x256xf32>, vector<8x256xf32>, vector<8x256xf32>, vector<8x256xf32>, vector<8x256xf32>, vector<8x256xf32>, vector<8x256xf32>, vector<8x256xf32>, vector<8x256xf32>, vector<8x256xf32>, vector<1x256xf32> -> vector<89x256xf32>
    %cst_42 = arith.constant dense<0.000000e+00> : vector<8x256xf32>
    %161 = tpu.matmul %129, %160, %cst_42 {dimension_numbers = #tpu.dot_dimension_numbers<[1], [0], [0], [1], [0, 0, 1, 1], [], []>} : vector<8x89xf32>, vector<89x256xf32>, vector<8x256xf32> -> vector<8x256xf32>
    %cst_43 = arith.constant 0.000000e+00 : f32
    %162 = vector.broadcast %cst_43 : f32 to vector<8x256xf32>
    %163 = arith.maximumf %161, %162 : vector<8x256xf32>
    %c0_44 = arith.constant 0 : index
    %c0_45 = arith.constant 0 : index
    %164 = vector.load %arg3[%c0_44, %c0_45] : memref<16x89xf32, #tpu.memory_space<vmem>>, vector<16x89xf32>
    %c5_i32_46 = arith.constant 5 : i32
    %165 = tpu.dynamic_rotate %163 by %c5_i32_46 dim 1 : vector<8x256xf32>, i32 -> vector<8x256xf32>
    %166 = vector.broadcast %27 : vector<1x256xf32> to vector<8x256xf32>
    %167 = arith.mulf %165, %166 : vector<8x256xf32>
    %c4_i32_47 = arith.constant 4 : i32
    %168 = tpu.dynamic_rotate %163 by %c4_i32_47 dim 1 : vector<8x256xf32>, i32 -> vector<8x256xf32>
    %169 = vector.broadcast %38 : vector<1x256xf32> to vector<8x256xf32>
    %170 = arith.mulf %168, %169 : vector<8x256xf32>
    %c3_i32_48 = arith.constant 3 : i32
    %171 = tpu.dynamic_rotate %163 by %c3_i32_48 dim 1 : vector<8x256xf32>, i32 -> vector<8x256xf32>
    %172 = vector.broadcast %49 : vector<1x256xf32> to vector<8x256xf32>
    %173 = arith.mulf %171, %172 : vector<8x256xf32>
    %c2_i32_49 = arith.constant 2 : i32
    %174 = tpu.dynamic_rotate %163 by %c2_i32_49 dim 1 : vector<8x256xf32>, i32 -> vector<8x256xf32>
    %175 = vector.broadcast %60 : vector<1x256xf32> to vector<8x256xf32>
    %176 = arith.mulf %174, %175 : vector<8x256xf32>
    %c1_i32_50 = arith.constant 1 : i32
    %177 = tpu.dynamic_rotate %163 by %c1_i32_50 dim 1 : vector<8x256xf32>, i32 -> vector<8x256xf32>
    %178 = vector.broadcast %71 : vector<1x256xf32> to vector<8x256xf32>
    %179 = arith.mulf %177, %178 : vector<8x256xf32>
    %c255_i32_51 = arith.constant 255 : i32
    %180 = tpu.dynamic_rotate %163 by %c255_i32_51 dim 1 : vector<8x256xf32>, i32 -> vector<8x256xf32>
    %181 = vector.broadcast %82 : vector<1x256xf32> to vector<8x256xf32>
    %182 = arith.mulf %180, %181 : vector<8x256xf32>
    %c254_i32_52 = arith.constant 254 : i32
    %183 = tpu.dynamic_rotate %163 by %c254_i32_52 dim 1 : vector<8x256xf32>, i32 -> vector<8x256xf32>
    %184 = vector.broadcast %93 : vector<1x256xf32> to vector<8x256xf32>
    %185 = arith.mulf %183, %184 : vector<8x256xf32>
    %c253_i32_53 = arith.constant 253 : i32
    %186 = tpu.dynamic_rotate %163 by %c253_i32_53 dim 1 : vector<8x256xf32>, i32 -> vector<8x256xf32>
    %187 = vector.broadcast %104 : vector<1x256xf32> to vector<8x256xf32>
    %188 = arith.mulf %186, %187 : vector<8x256xf32>
    %c252_i32_54 = arith.constant 252 : i32
    %189 = tpu.dynamic_rotate %163 by %c252_i32_54 dim 1 : vector<8x256xf32>, i32 -> vector<8x256xf32>
    %190 = vector.broadcast %115 : vector<1x256xf32> to vector<8x256xf32>
    %191 = arith.mulf %189, %190 : vector<8x256xf32>
    %c251_i32_55 = arith.constant 251 : i32
    %192 = tpu.dynamic_rotate %163 by %c251_i32_55 dim 1 : vector<8x256xf32>, i32 -> vector<8x256xf32>
    %193 = vector.broadcast %126 : vector<1x256xf32> to vector<8x256xf32>
    %194 = arith.mulf %192, %193 : vector<8x256xf32>
    %195 = tpu.concatenate %167, %170, %173, %176, %179, %163, %182, %185, %188, %191, %194, %127 in 0 : vector<8x256xf32>, vector<8x256xf32>, vector<8x256xf32>, vector<8x256xf32>, vector<8x256xf32>, vector<8x256xf32>, vector<8x256xf32>, vector<8x256xf32>, vector<8x256xf32>, vector<8x256xf32>, vector<8x256xf32>, vector<1x256xf32> -> vector<89x256xf32>
    %cst_56 = arith.constant dense<0.000000e+00> : vector<16x256xf32>
    %196 = tpu.matmul %164, %195, %cst_56 {dimension_numbers = #tpu.dot_dimension_numbers<[1], [0], [0], [1], [0, 0, 1, 1], [], []>} : vector<16x89xf32>, vector<89x256xf32>, vector<16x256xf32> -> vector<16x256xf32>
    %c0_57 = arith.constant 0 : index
    %c0_58 = arith.constant 0 : index
    %197 = vector.load %arg4[%c0_57, %c0_58] : memref<16x256xf32, #tpu.memory_space<vmem>>, vector<16x256xf32>
    tpu.vector_store %arg4[%c0_57, %c0_58], %196 {strides = array<i32>} : memref<16x256xf32, #tpu.memory_space<vmem>>, vector<16x256xf32>,
    return
  }
  func.func @transform_0(%arg0: i32) -> (i32, i32) {
    %c0_i32 = arith.constant 0 : i32
    %c0_i32_0 = arith.constant 0 : i32
    return %c0_i32, %arg0 : i32, i32
  }
  func.func @transform_1(%arg0: i32) -> (i32, i32) {
    %c0_i32 = arith.constant 0 : i32
    %c0_i32_0 = arith.constant 0 : i32
    %c0_i32_1 = arith.constant 0 : i32
    return %c0_i32, %c0_i32_0 : i32, i32
  }
  func.func @transform_2(%arg0: i32) -> (i32, i32) {
    %c0_i32 = arith.constant 0 : i32
    %c0_i32_0 = arith.constant 0 : i32
    %c0_i32_1 = arith.constant 0 : i32
    return %c0_i32, %c0_i32_0 : i32, i32
  }
  func.func @transform_3(%arg0: i32) -> (i32, i32) {
    %c0_i32 = arith.constant 0 : i32
    %c0_i32_0 = arith.constant 0 : i32
    return %c0_i32, %arg0 : i32, i32
  }
}

</mosaic_0001>

<llo_original>
// kernel: eeg_decoder_forward.1
$region0: #{eeg_decoder_forward.1}
  #allocation0 [shape = 'u32[]', space=smem, size = 0x4, offset = 0x4, fixed_abs, tag = 'smem constant byte address 0x4 - core index']
  #allocation1 [shape = 'u32[144,128]{1,0:T(1,128)}', space=vmem, size = 0x12000, scoped, tag = 'internal scratch']
  %s0 = inlined_call_operand.vmem [shape: f32[8,256], index: 0, kind: input, shape index: {}]
  %s1 = inlined_call_operand.vmem [shape: f32[8,89], index: 1, kind: input, shape index: {}]
  %s2 = inlined_call_operand.vmem [shape: f32[16,89], index: 2, kind: input, shape index: {}]
  %s3 = inlined_call_operand.vmem [shape: f32[16,256], index: 3, kind: output, shape index: {}]
  %s4 = sld [smem:[#allocation0]]
  $region22: #{eeg_decoder_forward.1} parent=0
    _
  %s6 = ssub.s32 1, %s4
  %s7 = scalar_select 0, %s6, %s4
  // Predicated region
  $region2: #{eeg_decoder_forward.1} parent=0 // pred_check
    _
  $region3: #{eeg_decoder_forward.1} parent=0 // pred_check_branch
    %9 = sbr.rel (0) target = $region5
  $region4: #{eeg_decoder_forward.1} parent=0 // pred_region
    _
  $region5: #{eeg_decoder_forward.1} parent=0 // pred_fallthru
    _
  // Predicated region
  $region6: #{eeg_decoder_forward.1} parent=0 // pred_check
    _
  $region7: #{eeg_decoder_forward.1} parent=0 // pred_check_branch
    %11 = sbr.rel (0) target = $region9
  $region8: #{eeg_decoder_forward.1} parent=0 // pred_region
    _
  $region9: #{eeg_decoder_forward.1} parent=0 // pred_fallthru
    _
  // Predicated region
  $region10: #{eeg_decoder_forward.1} parent=0 // pred_check
    _
  $region11: #{eeg_decoder_forward.1} parent=0 // pred_check_branch
    %13 = sbr.rel (0) target = $region13
  $region12: #{eeg_decoder_forward.1} parent=0 // pred_region
    _
  $region13: #{eeg_decoder_forward.1} parent=0 // pred_fallthru
    _
  %v14 = vlaneseq
  %v15 = vand.u32 %v14, 127
  %v16 = vadd.s32 %v15, 128
  %vm17 = vcmp.lt.s32.totalorder %v15, 0
  %v18 = vsub.s32 0, %v15
  %v19 = vsel %vm17, %v18, %v15
  %v20 = vshrl.u32 %v19, 7
  %v21 = vand.u32 %v19, 127
  %v22 = vsub.s32 0, %v21
  %v23 = vsel %vm17, %v22, %v21
  %vm24 = vcmp.lt.s32.totalorder %v16, 0
  %v25 = vsub.s32 0, %v16
  %v26 = vsel %vm24, %v25, %v16
  %v27 = vshrl.u32 %v26, 7
  %v28 = vand.u32 %v26, 127
  %v29 = vsub.s32 0, %v28
  %v30 = vsel %vm24, %v29, %v28
  %vm31 = vcmp.ne.s32.totalorder %v23, 0
  %vm32 = vcmp.ne.s32.totalorder %v30, 0
  %vm33 = vcmp.lt.s32.totalorder %v23, 0
  %vm34 = vcmp.lt.s32.totalorder %v30, 0
  %vm35 = vmand %vm33, %vm31
  %vm36 = vmand %vm34, %vm32
  %v37 = vadd.s32 %v23, 128
  %v38 = vadd.s32 %v30, 128
  %v39 = vsel %vm35, %v37, %v23
  %v40 = vsel %vm36, %v38, %v30
  %v41 = vadd.s32 %v39, 4294967291
  %v42 = vadd.s32 %v40, 4294967291
  %vm43 = vcmp.ge.s32.totalorder %v41, 0
  %vm44 = vcmp.ge.s32.totalorder %v42, 0
  %vm45 = vcmp.lt.s32.totalorder %v41, 128
  %vm46 = vcmp.lt.s32.totalorder %v42, 128
  %vm47 = vmand %vm43, %vm45
  %vm48 = vmand %vm44, %vm46
  %v49 = vsel %vm47, 1, 0
  %v50 = vsel %vm48, 1, 0
  %v51 = vcvt.s32.f32 %v49
  %v52 = vcvt.s32.f32 %v50
  %v53 = vadd.s32 %v39, 4294967292
  %v54 = vadd.s32 %v40, 4294967292
  %vm55 = vcmp.ge.s32.totalorder %v53, 0
  %vm56 = vcmp.ge.s32.totalorder %v54, 0
  %vm57 = vcmp.lt.s32.totalorder %v53, 128
  %vm58 = vcmp.lt.s32.totalorder %v54, 128
  %vm59 = vmand %vm55, %vm57
  %vm60 = vmand %vm56, %vm58
  %v61 = vsel %vm59, 1, 0
  %v62 = vsel %vm60, 1, 0
  %v63 = vcvt.s32.f32 %v61
  %v64 = vcvt.s32.f32 %v62
  %v65 = vadd.s32 %v39, 4294967293
  %v66 = vadd.s32 %v40, 4294967293
  %vm67 = vcmp.ge.s32.totalorder %v65, 0
  %vm68 = vcmp.ge.s32.totalorder %v66, 0
  %vm69 = vcmp.lt.s32.totalorder %v65, 128
  %vm70 = vcmp.lt.s32.totalorder %v66, 128
  %vm71 = vmand %vm67, %vm69
  %vm72 = vmand %vm68, %vm70
  %v73 = vsel %vm71, 1, 0
  %v74 = vsel %vm72, 1, 0
  %v75 = vcvt.s32.f32 %v73
  %v76 = vcvt.s32.f32 %v74
  %v77 = vadd.s32 %v39, 4294967294
  %v78 = vadd.s32 %v40, 4294967294
  %vm79 = vcmp.ge.s32.totalorder %v77, 0
  %vm80 = vcmp.ge.s32.totalorder %v78, 0
  %vm81 = vcmp.lt.s32.totalorder %v77, 128
  %vm82 = vcmp.lt.s32.totalorder %v78, 128
  %vm83 = vmand %vm79, %vm81
  %vm84 = vmand %vm80, %vm82
  %v85 = vsel %vm83, 1, 0
  %v86 = vsel %vm84, 1, 0
  %v87 = vcvt.s32.f32 %v85
  %v88 = vcvt.s32.f32 %v86
  %v89 = vadd.s32 %v39, 4294967295
  %v90 = vadd.s32 %v40, 4294967295
  %vm91 = vcmp.ge.s32.totalorder %v89, 0
  %vm92 = vcmp.ge.s32.totalorder %v90, 0
  %vm93 = vcmp.lt.s32.totalorder %v89, 128
  %vm94 = vcmp.lt.s32.totalorder %v90, 128
  %vm95 = vmand %vm91, %vm93
  %vm96 = vmand %vm92, %vm94
  %v97 = vsel %vm95, 1, 0
  %v98 = vsel %vm96, 1, 0
  %v99 = vcvt.s32.f32 %v97
  %v100 = vcvt.s32.f32 %v98
  %v101 = vadd.s32 %v39, 1
  %v102 = vadd.s32 %v40, 1
  %vm103 = vcmp.ge.s32.totalorder %v101, 0
  %vm104 = vcmp.ge.s32.totalorder %v102, 0
  %vm105 = vcmp.lt.s32.totalorder %v101, 128
  %vm106 = vcmp.lt.s32.totalorder %v102, 128
  %vm107 = vmand %vm103, %vm105
  %vm108 = vmand %vm104, %vm106
  %v109 = vsel %vm107, 1, 0
  %v110 = vsel %vm108, 1, 0
  %v111 = vcvt.s32.f32 %v109
  %v112 = vcvt.s32.f32 %v110
  %v113 = vadd.s32 %v39, 2
  %v114 = vadd.s32 %v40, 2
  %vm115 = vcmp.ge.s32.totalorder %v113, 0
  %vm116 = vcmp.ge.s32.totalorder %v114, 0
  %vm117 = vcmp.lt.s32.totalorder %v113, 128
  %vm118 = vcmp.lt.s32.totalorder %v114, 128
  %vm119 = vmand %vm115, %vm117
  %vm120 = vmand %vm116, %vm118
  %v121 = vsel %vm119, 1, 0
  %v122 = vsel %vm120, 1, 0
  %v123 = vcvt.s32.f32 %v121
  %v124 = vcvt.s32.f32 %v122
  %v125 = vadd.s32 %v39, 3
  %v126 = vadd.s32 %v40, 3
  %vm127 = vcmp.ge.s32.totalorder %v125, 0
  %vm128 = vcmp.ge.s32.totalorder %v126, 0
  %vm129 = vcmp.lt.s32.totalorder %v125, 128
  %vm130 = vcmp.lt.s32.totalorder %v126, 128
  %vm131 = vmand %vm127, %vm129
  %vm132 = vmand %vm128, %vm130
  %v133 = vsel %vm131, 1, 0
  %v134 = vsel %vm132, 1, 0
  %v135 = vcvt.s32.f32 %v133
  %v136 = vcvt.s32.f32 %v134
  %v137 = vadd.s32 %v39, 4
  %v138 = vadd.s32 %v40, 4
  %vm139 = vcmp.ge.s32.totalorder %v137, 0
  %vm140 = vcmp.ge.s32.totalorder %v138, 0
  %vm141 = vcmp.lt.s32.totalorder %v137, 128
  %vm142 = vcmp.lt.s32.totalorder %v138, 128
  %vm143 = vmand %vm139, %vm141
  %vm144 = vmand %vm140, %vm142
  %v145 = vsel %vm143, 1, 0
  %v146 = vsel %vm144, 1, 0
  %v147 = vcvt.s32.f32 %v145
  %v148 = vcvt.s32.f32 %v146
  %v149 = vadd.s32 %v39, 5
  %v150 = vadd.s32 %v40, 5
  %vm151 = vcmp.ge.s32.totalorder %v149, 0
  %vm152 = vcmp.ge.s32.totalorder %v150, 0
  %vm153 = vcmp.lt.s32.totalorder %v149, 128
  %vm154 = vcmp.lt.s32.totalorder %v150, 128
  %vm155 = vmand %vm151, %vm153
  %vm156 = vmand %vm152, %vm154
  %v157 = vsel %vm155, 1, 0
  %v158 = vsel %vm156, 1, 0
  %v159 = vcvt.s32.f32 %v157
  %v160 = vcvt.s32.f32 %v158
  %v161 = vld [vmem:[%s0] sm:$0xff]
  %v162 = vld [vmem:[%s0 + $0x8] sm:$0xff]
  %v163 = vld [vmem:[%s1] sm:$0xff]
  %164 = vrot.lane.b32.xlu0 %v161, 5
  %v165 = vpop.permute.xlu0 %164
  %166 = vrot.lane.b32.xlu0 %v162, 5
  %v167 = vpop.permute.xlu0 %166
  %vm168 = vcmp.lt.s32.totalorder %v15, 5
  %v169 = vsel %vm168, %v165, %v167
  %v170 = vsel %vm168, %v167, %v165
  %v171 = vmul.f32 %v170, %v51
  %v172 = vmul.f32 %v169, %v52
  %173 = vrot.lane.b32.xlu0 %v161, 4
  %v174 = vpop.permute.xlu0 %173
  %175 = vrot.lane.b32.xlu0 %v162, 4
  %v176 = vpop.permute.xlu0 %175
  %vm177 = vcmp.lt.s32.totalorder %v15, 4
  %v178 = vsel %vm177, %v174, %v176
  %v179 = vsel %vm177, %v176, %v174
  %v180 = vmul.f32 %v179, %v63
  %v181 = vmul.f32 %v178, %v64
  %182 = vrot.lane.b32.xlu0 %v161, 3
  %v183 = vpop.permute.xlu0 %182
  %184 = vrot.lane.b32.xlu0 %v162, 3
  %v185 = vpop.permute.xlu0 %184
  %vm186 = vcmp.lt.s32.totalorder %v15, 3
  %v187 = vsel %vm186, %v183, %v185
  %v188 = vsel %vm186, %v185, %v183
  %v189 = vmul.f32 %v188, %v75
  %v190 = vmul.f32 %v187, %v76
  %191 = vrot.lane.b32.xlu0 %v161, 2
  %v192 = vpop.permute.xlu0 %191
  %193 = vrot.lane.b32.xlu0 %v162, 2
  %v194 = vpop.permute.xlu0 %193
  %vm195 = vcmp.lt.s32.totalorder %v15, 2
  %v196 = vsel %vm195, %v192, %v194
  %v197 = vsel %vm195, %v194, %v192
  %v198 = vmul.f32 %v197, %v87
  %v199 = vmul.f32 %v196, %v88
  %200 = vrot.lane.b32.xlu0 %v161, 1
  %v201 = vpop.permute.xlu0 %200
  %202 = vrot.lane.b32.xlu0 %v162, 1
  %v203 = vpop.permute.xlu0 %202
  %vm204 = vcmp.lt.s32.totalorder %v15, 1
  %v205 = vsel %vm204, %v201, %v203
  %v206 = vsel %vm204, %v203, %v201
  %v207 = vmul.f32 %v206, %v99
  %v208 = vmul.f32 %v205, %v100
  %209 = vrot.lane.b32.xlu0 %v161, 127
  %v210 = vpop.permute.xlu0 %209
  %211 = vrot.lane.b32.xlu0 %v162, 127
  %v212 = vpop.permute.xlu0 %211
  %vm213 = vcmp.lt.s32.totalorder %v15, 127
  %v214 = vsel %vm213, %v210, %v212
  %v215 = vsel %vm213, %v212, %v210
  %v216 = vmul.f32 %v214, %v111
  %v217 = vmul.f32 %v215, %v112
  %218 = vrot.lane.b32.xlu0 %v161, 126
  %v219 = vpop.permute.xlu0 %218
  %220 = vrot.lane.b32.xlu0 %v162, 126
  %v221 = vpop.permute.xlu0 %220
  %vm222 = vcmp.lt.s32.totalorder %v15, 126
  %v223 = vsel %vm222, %v219, %v221
  %v224 = vsel %vm222, %v221, %v219
  %v225 = vmul.f32 %v223, %v123
  %v226 = vmul.f32 %v224, %v124
  %227 = vrot.lane.b32.xlu0 %v161, 125
  %v228 = vpop.permute.xlu0 %227
  %229 = vrot.lane.b32.xlu0 %v162, 125
  %v230 = vpop.permute.xlu0 %229
  %vm231 = vcmp.lt.s32.totalorder %v15, 125
  %v232 = vsel %vm231, %v228, %v230
  %v233 = vsel %vm231, %v230, %v228
  %v234 = vmul.f32 %v232, %v135
  %v235 = vmul.f32 %v233, %v136
  %236 = vrot.lane.b32.xlu0 %v161, 124
  %v237 = vpop.permute.xlu0 %236
  %238 = vrot.lane.b32.xlu0 %v162, 124
  %v239 = vpop.permute.xlu0 %238
  %vm240 = vcmp.lt.s32.totalorder %v15, 124
  %v241 = vsel %vm240, %v237, %v239
  %v242 = vsel %vm240, %v239, %v237
  %v243 = vmul.f32 %v241, %v147
  %v244 = vmul.f32 %v242, %v148
  %245 = vrot.lane.b32.xlu0 %v161, 123
  %v246 = vpop.permute.xlu0 %245
  %247 = vrot.lane.b32.xlu0 %v162, 123
  %v248 = vpop.permute.xlu0 %247
  %vm249 = vcmp.lt.s32.totalorder %v15, 123
  %v250 = vsel %vm249, %v246, %v248
  %v251 = vsel %vm249, %v248, %v246
  %v252 = vmul.f32 %v250, %v159
  %v253 = vmul.f32 %v251, %v160
  %vm254 = vcmask 728064
  %v256 = vsel %vm254, %v163, 0
  %vm258 = vcmask 1040384
  %v260 = vsel %vm258, 1.0, 0
  %262 = vmatprep.subr.mxu0 %v172
  %263 = vmatpush1.msra.mxu0 %v171
  %264 = vmatprep.subr.mxu0 %v181
  %265 = vmatpush1.msra.mxu0 %v180
  %266 = vmatprep.subr.mxu0 %v190
  %267 = vmatpush1.msra.mxu0 %v189
  %268 = vmatprep.subr.mxu0 %v199
  %269 = vmatpush1.msra.mxu0 %v198
  %270 = vmatprep.subr.mxu0 %v208
  %271 = vmatpush1.msra.mxu0 %v207
  %272 = vmatprep.subr.mxu0 %v162
  %273 = vmatpush1.msra.mxu0 %v161
  %274 = vmatprep.subr.mxu0 %v217
  %275 = vmatpush1.msra.mxu0 %v216
  %276 = vmatprep.subr.mxu0 %v226
  %277 = vmatpush1.msra.mxu0 %v225
  %278 = vmatprep.subr.mxu0 %v235
  %279 = vmatpush1.msra.mxu0 %v234
  %280 = vmatprep.subr.mxu0 %v244
  %281 = vmatpush1.msra.mxu0 %v243
  %282 = vmatprep.subr.mxu0 %v253
  %283 = vmatpush1.msra.mxu0 %v252
  %284 = vmatprep.subr.mxu0 %v260
  %285 = vmatpush1.msra.mxu0 %v260
  %286 = vmatprep.subr.mxu0 0.0
  %287 = vmatpush1.msra.mxu0 0.0
  %288 = vmatprep.subr.mxu0 0.0
  %289 = vmatpush1.msra.mxu0 0.0
  %290 = vmatprep.subr.mxu0 0.0
  %291 = vmatpush1.msra.mxu0 0.0
  %292 = vmatprep.subr.mxu0 0.0
  %293 = vmatpush1.msra.mxu0 0.0
  %294 = vmatprep.subr.mxu0 0.0
  %295 = vmatpush1.msra.mxu0 0.0
  %296 = vmatprep.subr.mxu0 0.0
  %297 = vmatpush1.msra.mxu0 0.0
  %298 = vmatprep.subr.mxu0 0.0
  %299 = vmatpush1.msra.mxu0 0.0
  %300 = vmatprep.subr.mxu0 0.0
  %301 = vmatpush1.msra.mxu0 0.0
  %302 = vmatprep.subr.mxu0 0.0
  %303 = vmatpush1.msra.mxu0 0.0
  %304 = vmatprep.subr.mxu0 0.0
  %305 = vmatpush1.msra.mxu0 0.0
  %306 = vmatprep.subr.mxu0 0.0
  %307 = vmatpush1.msra.mxu0 0.0
  %308 = vmatprep.subr.mxu0 0.0
  %309 = vmatpush1.msra.mxu0 0.0
  %310 = vmatprep.subr.mxu0 0.0
  %311 = vmatpush1.msra.mxu0 0.0
  %312 = vmatprep.subr.mxu0 0.0
  %313 = vmatpush1.msra.mxu0 0.0
  %314 = vmatprep.subr.mxu0 0.0
  %315 = vmatpush1.msra.mxu0 0.0
  %316 = vmatprep.subr.mxu0 0.0
  %317 = vmatpush1.msra.mxu0 0.0
  %318 = vmatprep.subr.mxu0 0.0
  %319 = vmatpush1.msra.mxu0 0.0
  %320 = vmatprep.subr.mxu0 0.0
  %321 = vmatpush1.msra.mxu0 0.0
  %322 = vmatprep.subr.mxu0 0.0
  %323 = vmatpush1.msra.mxu0 0.0
  %324 = vmatprep.subr.mxu0 0.0
  %325 = vmatpush1.msra.mxu0 0.0
  %326 = vmatprep.mubr.f32.mxu0 0.0
  %327 = vmatmul.mubr.f32.gmra.mrb[0].mxu0 %v256
  %v328 = vpop.f32.mrb[0].mxu0
  %v329 = vadd.f32 0.0, %v328
  %v330 = vpop.f32.mrb[0].mxu0
  %v331 = vadd.f32 0.0, %v330
  %332 = vdwg.mxu0
  %v333 = vmax.f32 %v329, 0.0
  %v334 = vmax.f32 %v331, 0.0
  %v335 = vld [vmem:[%s2] sm:$0xff]
  %v336 = vld [vmem:[%s2 + $0x8] sm:$0xff]
  %337 = vrot.lane.b32.xlu0 %v333, 5
  %v338 = vpop.permute.xlu0 %337
  %339 = vrot.lane.b32.xlu0 %v334, 5
  %v340 = vpop.permute.xlu0 %339
  %v341 = vsel %vm168, %v338, %v340
  %v342 = vsel %vm168, %v340, %v338
  %v343 = vmul.f32 %v342, %v51
  %v344 = vmul.f32 %v341, %v52
  %345 = vrot.lane.b32.xlu0 %v333, 4
  %v346 = vpop.permute.xlu0 %345
  %347 = vrot.lane.b32.xlu0 %v334, 4
  %v348 = vpop.permute.xlu0 %347
  %v349 = vsel %vm177, %v346, %v348
  %v350 = vsel %vm177, %v348, %v346
  %v351 = vmul.f32 %v350, %v63
  %v352 = vmul.f32 %v349, %v64
  %353 = vrot.lane.b32.xlu0 %v333, 3
  %v354 = vpop.permute.xlu0 %353
  %355 = vrot.lane.b32.xlu0 %v334, 3
  %v356 = vpop.permute.xlu0 %355
  %v357 = vsel %vm186, %v354, %v356
  %v358 = vsel %vm186, %v356, %v354
  %v359 = vmul.f32 %v358, %v75
  %v360 = vmul.f32 %v357, %v76
  %361 = vrot.lane.b32.xlu0 %v333, 2
  %v362 = vpop.permute.xlu0 %361
  %363 = vrot.lane.b32.xlu0 %v334, 2
  %v364 = vpop.permute.xlu0 %363
  %v365 = vsel %vm195, %v362, %v364
  %v366 = vsel %vm195, %v364, %v362
  %v367 = vmul.f32 %v366, %v87
  %v368 = vmul.f32 %v365, %v88
  %369 = vrot.lane.b32.xlu0 %v333, 1
  %v370 = vpop.permute.xlu0 %369
  %371 = vrot.lane.b32.xlu0 %v334, 1
  %v372 = vpop.permute.xlu0 %371
  %v373 = vsel %vm204, %v370, %v372
  %v374 = vsel %vm204, %v372, %v370
  %v375 = vmul.f32 %v374, %v99
  %v376 = vmul.f32 %v373, %v100
  %377 = vrot.lane.b32.xlu0 %v333, 127
  %v378 = vpop.permute.xlu0 %377
  %379 = vrot.lane.b32.xlu0 %v334, 127
  %v380 = vpop.permute.xlu0 %379
  %v381 = vsel %vm213, %v378, %v380
  %v382 = vsel %vm213, %v380, %v378
  %v383 = vmul.f32 %v381, %v111
  %v384 = vmul.f32 %v382, %v112
  %385 = vrot.lane.b32.xlu0 %v333, 126
  %v386 = vpop.permute.xlu0 %385
  %387 = vrot.lane.b32.xlu0 %v334, 126
  %v388 = vpop.permute.xlu0 %387
  %v389 = vsel %vm222, %v386, %v388
  %v390 = vsel %vm222, %v388, %v386
  %v391 = vmul.f32 %v389, %v123
  %v392 = vmul.f32 %v390, %v124
  %393 = vrot.lane.b32.xlu0 %v333, 125
  %v394 = vpop.permute.xlu0 %393
  %395 = vrot.lane.b32.xlu0 %v334, 125
  %v396 = vpop.permute.xlu0 %395
  %v397 = vsel %vm231, %v394, %v396
  %v398 = vsel %vm231, %v396, %v394
  %v399 = vmul.f32 %v397, %v135
  %v400 = vmul.f32 %v398, %v136
  %401 = vrot.lane.b32.xlu0 %v333, 124
  %v402 = vpop.permute.xlu0 %401
  %403 = vrot.lane.b32.xlu0 %v334, 124
  %v404 = vpop.permute.xlu0 %403
  %v405 = vsel %vm240, %v402, %v404
  %v406 = vsel %vm240, %v404, %v402
  %v407 = vmul.f32 %v405, %v147
  %v408 = vmul.f32 %v406, %v148
  %409 = vrot.lane.b32.xlu0 %v333, 123
  %v410 = vpop.permute.xlu0 %409
  %411 = vrot.lane.b32.xlu0 %v334, 123
  %v412 = vpop.permute.xlu0 %411
  %v413 = vsel %vm249, %v410, %v412
  %v414 = vsel %vm249, %v412, %v410
  %v415 = vmul.f32 %v413, %v159
  %v416 = vmul.f32 %v414, %v160
  %v418 = vsel %vm254, %v335, 0
  %v421 = vsel %vm254, %v336, 0
  %423 = vmatprep.subr.mxu0 %v344
  %424 = vmatpush1.msra.mxu0 %v343
  %425 = vmatprep.subr.mxu0 %v352
  %426 = vmatpush1.msra.mxu0 %v351
  %427 = vmatprep.subr.mxu0 %v360
  %428 = vmatpush1.msra.mxu0 %v359
  %429 = vmatprep.subr.mxu0 %v368
  %430 = vmatpush1.msra.mxu0 %v367
  %431 = vmatprep.subr.mxu0 %v376
  %432 = vmatpush1.msra.mxu0 %v375
  %433 = vmatprep.subr.mxu0 %v334
  %434 = vmatpush1.msra.mxu0 %v333
  %435 = vmatprep.subr.mxu0 %v384
  %436 = vmatpush1.msra.mxu0 %v383
  %437 = vmatprep.subr.mxu0 %v392
  %438 = vmatpush1.msra.mxu0 %v391
  %439 = vmatprep.subr.mxu0 %v400
  %440 = vmatpush1.msra.mxu0 %v399
  %441 = vmatprep.subr.mxu0 %v408
  %442 = vmatpush1.msra.mxu0 %v407
  %443 = vmatprep.subr.mxu0 %v416
  %444 = vmatpush1.msra.mxu0 %v415
  %445 = vmatprep.subr.mxu0 %v260
  %446 = vmatpush1.msra.mxu0 %v260
  %447 = vmatprep.subr.mxu0 0.0
  %448 = vmatpush1.msra.mxu0 0.0
  %449 = vmatprep.subr.mxu0 0.0
  %450 = vmatpush1.msra.mxu0 0.0
  %451 = vmatprep.subr.mxu0 0.0
  %452 = vmatpush1.msra.mxu0 0.0
  %453 = vmatprep.subr.mxu0 0.0
  %454 = vmatpush1.msra.mxu0 0.0
  %455 = vmatprep.subr.mxu0 0.0
  %456 = vmatpush1.msra.mxu0 0.0
  %457 = vmatprep.subr.mxu0 0.0
  %458 = vmatpush1.msra.mxu0 0.0
  %459 = vmatprep.subr.mxu0 0.0
  %460 = vmatpush1.msra.mxu0 0.0
  %461 = vmatprep.subr.mxu0 0.0
  %462 = vmatpush1.msra.mxu0 0.0
  %463 = vmatprep.subr.mxu0 0.0
  %464 = vmatpush1.msra.mxu0 0.0
  %465 = vmatprep.subr.mxu0 0.0
  %466 = vmatpush1.msra.mxu0 0.0
  %467 = vmatprep.subr.mxu0 0.0
  %468 = vmatpush1.msra.mxu0 0.0
  %469 = vmatprep.subr.mxu0 0.0
  %470 = vmatpush1.msra.mxu0 0.0
  %471 = vmatprep.subr.mxu0 0.0
  %472 = vmatpush1.msra.mxu0 0.0
  %473 = vmatprep.subr.mxu0 0.0
  %474 = vmatpush1.msra.mxu0 0.0
  %475 = vmatprep.subr.mxu0 0.0
  %476 = vmatpush1.msra.mxu0 0.0
  %477 = vmatprep.subr.mxu0 0.0
  %478 = vmatpush1.msra.mxu0 0.0
  %479 = vmatprep.subr.mxu0 0.0
  %480 = vmatpush1.msra.mxu0 0.0
  %481 = vmatprep.subr.mxu0 0.0
  %482 = vmatpush1.msra.mxu0 0.0
  %483 = vmatprep.subr.mxu0 0.0
  %484 = vmatpush1.msra.mxu0 0.0
  %485 = vmatprep.subr.mxu0 0.0
  %486 = vmatpush1.msra.mxu0 0.0
  %487 = vmatprep.mubr.f32.mxu0 0.0
  %488 = vmatmul.mubr.f32.gmra.mrb[0].mxu0 %v418
  %v489 = vpop.f32.mrb[0].mxu0
  %v490 = vadd.f32 0.0, %v489
  %v491 = vpop.f32.mrb[0].mxu0
  %v492 = vadd.f32 0.0, %v491
  %493 = vmatprep.mubr.f32.mxu0 0.0
  %494 = vmatmul.mubr.f32.gmra.mrb[0].mxu0 %v421
  %v495 = vpop.f32.mrb[0].mxu0
  %v496 = vadd.f32 0.0, %v495
  %v497 = vpop.f32.mrb[0].mxu0
  %v498 = vadd.f32 0.0, %v497
  %499 = vdwg.mxu0
  %500 = vst [vmem:[%s3] sm:$0xff] %v490
  %501 = vst [vmem:[%s3 + $0x8] sm:$0xff] %v492
  %502 = vst [vmem:[%s3 + $0x10] sm:$0xff] %v496
  %503 = vst [vmem:[%s3 + $0x18] sm:$0xff] %v498
  // Predicated region
  $region14: #{eeg_decoder_forward.1} parent=0 // pred_check
    _
  $region15: #{eeg_decoder_forward.1} parent=0 // pred_check_branch
    %505 = sbr.rel (0) target = $region17
  $region16: #{eeg_decoder_forward.1} parent=0 // pred_region
    _
  $region17: #{eeg_decoder_forward.1} parent=0 // pred_fallthru
    _
  // Predicated region
  $region18: #{eeg_decoder_forward.1} parent=0 // pred_check
    _
  $region19: #{eeg_decoder_forward.1} parent=0 // pred_check_branch
    %507 = sbr.rel (0) target = $region21
  $region20: #{eeg_decoder_forward.1} parent=0 // pred_region
    _
  $region21: #{eeg_decoder_forward.1} parent=0 // pred_fallthru
    _

</llo_original>
